<compile_context>
chip_gen: v6e
topology: v6e:2x2x1
jax: 0.10.0
libtpu: 0.0.40
codegen_flags: <defaults>
</compile_context>

<pallas_src>
import jax
import jax.numpy as jnp
from jax.experimental import pallas as pl
from jax.experimental.pallas import tpu as pltpu

NEG_SLOPE = 0.2                       # LeakyReLU negative_slope (module default)
MASK_VAL = -1e30                      # finite mask fill (keeps online softmax NaN-free)
LIN_SCALE = 0.5 * (1.0 + NEG_SLOPE)   # linear half of: leaky(z) = a*z + b*|z|
ABS_SCALE = 0.5 * (1.0 - NEG_SLOPE)   # |.| half


# ---------------------------------------------------------------------------
# Kernel 1: fused projection  feat = x @ [W_src | W_dst] + [b_src | b_dst]
#           plus the rank-1 linear score terms  (el . attn), (er . attn).
# ---------------------------------------------------------------------------
def _proj_kernel(x_ref, w_ref, b_ref, attn_ref,
                 el_ref, er_ref, lsrc_ref, ldst_ref):
    d = el_ref.shape[1]
    feat = jnp.dot(x_ref[...], w_ref[...],
                   preferred_element_type=jnp.float32) + b_ref[...]
    el = feat[:, :d]
    er = feat[:, d:]
    el_ref[...] = el
    er_ref[...] = er
    attn_col = attn_ref[...]                                    # (D, 1)
    lsrc_ref[...] = LIN_SCALE * jnp.dot(el, attn_col,
                                        preferred_element_type=jnp.float32)
    ldst_ref[...] = LIN_SCALE * jnp.dot(er, attn_col,
                                        preferred_element_type=jnp.float32)


def _project(x, w_cat, b_cat, attn_col, *, tile_n):
    n, fin = x.shape
    d2 = w_cat.shape[1]
    d = d2 // 2
    return pl.pallas_call(
        _proj_kernel,
        out_shape=(
            jax.ShapeDtypeStruct((n, d), jnp.float32),   # el
            jax.ShapeDtypeStruct((n, d), jnp.float32),   # er
            jax.ShapeDtypeStruct((n, 1), jnp.float32),   # lin_src = s*(el.attn)
            jax.ShapeDtypeStruct((n, 1), jnp.float32),   # lin_dst = s*(er.attn)
        ),
        grid_spec=pltpu.PrefetchScalarGridSpec(
            num_scalar_prefetch=0,
            grid=(n // tile_n,),
            in_specs=[
                pl.BlockSpec((tile_n, fin), lambda i: (i, 0)),   # x rows
                pl.BlockSpec((fin, d2), lambda i: (0, 0)),       # [W_src | W_dst]
                pl.BlockSpec((1, d2), lambda i: (0, 0)),         # [b_src | b_dst]
                pl.BlockSpec((d, 1), lambda i: (0, 0)),          # attn column
            ],
            out_specs=[
                pl.BlockSpec((tile_n, d), lambda i: (i, 0)),
                pl.BlockSpec((tile_n, d), lambda i: (i, 0)),
                pl.BlockSpec((tile_n, 1), lambda i: (i, 0)),
                pl.BlockSpec((tile_n, 1), lambda i: (i, 0)),
            ],
        ),
        compiler_params=pltpu.CompilerParams(
            dimension_semantics=("parallel",)),
    )(x, w_cat, b_cat, attn_col)


# ---------------------------------------------------------------------------
# Kernel 2: tiled edge scores + online (masked) edge softmax + aggregation.
# Grid = (dst tiles ["parallel"], src tiles ["arbitrary" = reduction]).
# ---------------------------------------------------------------------------
def _gatv2_attn_kernel(er_ref, el_ref, ldst_ref, lsrc_ref, c_ref, adj_ref,
                       out_ref, m_sc, l_sc, acc_sc):
    j = pl.program_id(1)

    @pl.when(j == 0)
    def _():
        m_sc[...] = jnp.full_like(m_sc, MASK_VAL)
        l_sc[...] = jnp.zeros_like(l_sc)
        acc_sc[...] = jnp.zeros_like(acc_sc)

    er = er_ref[...]          # (TD, D)  dst-node features of this dst tile
    el = el_ref[...]          # (TS, D)  src-node features of this src tile
    c = c_ref[...]            # (1, D)   ABS_SCALE * attn

    # leaky_relu(z) = LIN_SCALE*z + ABS_SCALE*|z|; the linear part is rank-1
    # and comes in precomputed (lin_dst + lin_src); only |z| needs the D-loop.
    z = er[:, None, :] + el[None, :, :]                      # (TD, TS, D)
    quad = jnp.sum(jnp.abs(z) * c[None, :, :], axis=-1)      # (TD, TS)
    s = quad + ldst_ref[...] + lsrc_ref[...]                 # + (TD,1) + (1,TS)

    # mask non-edges (int8 adjacency)
    s = jnp.where(adj_ref[...] != 0, s, MASK_VAL)

    # online softmax update (unnormalized); masked entries underflow to 0 once
    # a real edge has been seen for a row, and any all-masked prefix garbage is
    # wiped by alpha == 0 when the first real edge appears.
    m_prev = m_sc[...]
    m_new = jnp.maximum(m_prev, jnp.max(s, axis=-1, keepdims=True))
    alpha = jnp.exp(m_prev - m_new)
    p = jnp.exp(s - m_new)
    l_sc[...] = alpha * l_sc[...] + jnp.sum(p, axis=-1, keepdims=True)
    acc_sc[...] = alpha * acc_sc[...] + jnp.dot(p, el,
                                                preferred_element_type=jnp.float32)
    m_sc[...] = m_new

    @pl.when(j == pl.num_programs(1) - 1)
    def _():
        # deferred normalization: one reciprocal per dst row instead of N^2 divides
        denom = jnp.maximum(l_sc[...], 1e-30)   # zero-in-degree guard
        out_ref[...] = (acc_sc[...] * pl.reciprocal(denom)).astype(out_ref.dtype)


def gatv2_forward(x, w_src, b_src, w_dst, b_dst, attn, adj,
                  *, tile_dst=128, tile_src=128):
    n, _ = x.shape
    d = w_src.shape[1]
    assert n % tile_dst == 0 and n % tile_src == 0, "N must be tile-divisible"

    # fused projection weights:  x @ [W_src | W_dst] + [b_src | b_dst]
    w_cat = jnp.concatenate([w_src, w_dst], axis=1)          # (Fin, 2D)
    b_cat = jnp.concatenate([b_src, b_dst], axis=1)          # (1, 2D)
    attn_col = attn.reshape(d, 1)

    el, er, lsrc, ldst = _project(x, w_cat, b_cat, attn_col, tile_n=tile_dst)
    lin_src = lsrc.reshape(1, n)                             # per-src linear term
    lin_dst = ldst                                           # (N, 1) per-dst term
    c = (ABS_SCALE * attn).reshape(1, d)

    # adjacency as a 1-byte mask: 4x less HBM/VMEM traffic than f32
    adj_i8 = adj.astype(jnp.int8)

    n_dst, n_src = n // tile_dst, n // tile_src
    cost = pl.CostEstimate(
        flops=6 * n * n * d,                # add+abs+mul per edge-dim + aggregation
        transcendentals=n * n,              # one exp per edge slot
        bytes_accessed=n * n                # adj (int8)
        + n_dst * n * d * 4                 # el streamed once per dst tile
        + 3 * n * d * 4,                    # er + el(first pass) + out
    )

    return pl.pallas_call(
        _gatv2_attn_kernel,
        out_shape=jax.ShapeDtypeStruct((n, d), jnp.float32),
        grid_spec=pltpu.PrefetchScalarGridSpec(
            num_scalar_prefetch=0,
            grid=(n_dst, n_src),
            in_specs=[
                pl.BlockSpec((tile_dst, d), lambda i, j: (i, 0)),        # er (dst tile)
                pl.BlockSpec((tile_src, d), lambda i, j: (j, 0)),        # el (src tile)
                pl.BlockSpec((tile_dst, 1), lambda i, j: (i, 0)),        # lin_dst
                pl.BlockSpec((1, tile_src), lambda i, j: (0, j)),        # lin_src
                pl.BlockSpec((1, d), lambda i, j: (0, 0)),               # c = ABS_SCALE*attn
                pl.BlockSpec((tile_dst, tile_src), lambda i, j: (i, j)), # adjacency mask
            ],
            out_specs=pl.BlockSpec((tile_dst, d), lambda i, j: (i, 0)),
            scratch_shapes=[
                pltpu.VMEM((tile_dst, 1), jnp.float32),   # running max  m_i
                pltpu.VMEM((tile_dst, 1), jnp.float32),   # running denom l_i
                pltpu.VMEM((tile_dst, d), jnp.float32),   # f32 output accumulator
            ],
        ),
        compiler_params=pltpu.CompilerParams(
            dimension_semantics=("parallel", "arbitrary"),
            vmem_limit_bytes=48 * 1024 * 1024,
        ),
        cost_estimate=cost,
    )(er, el, lin_dst, lin_src, c, adj_i8)


def gatv2_reference(x, w_src, b_src, w_dst, b_dst, attn, adj):
    # pure-JAX reference for correctness checking
    el = x @ w_src + b_src
    er = x @ w_dst + b_dst
    z = el[None, :, :] + er[:, None, :]
    z = jnp.where(z > 0, z, NEG_SLOPE * z)
    s = jnp.sum(z * attn.reshape(1, 1, -1), axis=-1)
    s = jnp.where(adj > 0, s, MASK_VAL)
    p = jnp.exp(s - jnp.max(s, axis=-1, keepdims=True)) * adj
    a = p / jnp.sum(p, axis=-1, keepdims=True)
    return a @ el


if __name__ == "__main__":
    key = jax.random.PRNGKey(0)
    N, Fin, D = 256, 16, 128     # N nodes, in_feats, out_feats (num_heads forced to 1)
    k = jax.random.split(key, 6)

    # Deterministic xavier_normal_-style init (gain for 'relu' = sqrt(2)),
    # biases initialized to 0 as in reset_parameters().
    gain = jnp.sqrt(2.0)
    std_fc = gain * jnp.sqrt(2.0 / (Fin + D))
    std_attn = gain * jnp.sqrt(2.0 / (1 + D))

    x = jax.random.normal(k[0], (N, Fin), jnp.float32)
    w_src = std_fc * jax.random.normal(k[1], (Fin, D), jnp.float32)
    w_dst = std_fc * jax.random.normal(k[2], (Fin, D), jnp.float32)
    b_src = jnp.zeros((1, D), jnp.float32)
    b_dst = jnp.zeros((1, D), jnp.float32)
    attn = std_attn * jax.random.normal(k[3], (1, D), jnp.float32)

    # random adjacency with self-loops (no 0-in-degree nodes, matching
    # allow_zero_in_degree=False)
    adj = jax.random.bernoulli(k[4], 0.3, (N, N)).astype(jnp.float32)
    adj = jnp.maximum(adj, jnp.eye(N, dtype=jnp.float32))

    out = gatv2_forward(x, w_src, b_src, w_dst, b_dst, attn, adj)
    out = jax.block_until_ready(out)

    ref = gatv2_reference(x, w_src, b_src, w_dst, b_dst, attn, adj)
    assert jnp.allclose(out, ref, atol=2e-3, rtol=2e-3), "mismatch vs reference"

    print("KERNEL_OK")
</pallas_src>

<mosaic_0001>
module attributes {stable_mosaic.version = 11 : i64} {
  func.func @_proj_kernel(%arg0: i32, %arg1: memref<128x16xf32, #tpu.memory_space<vmem>>, %arg2: memref<16x256xf32, #tpu.memory_space<vmem>>, %arg3: memref<1x256xf32, #tpu.memory_space<vmem>>, %arg4: memref<128x1xf32, #tpu.memory_space<vmem>>, %arg5: memref<128x128xf32, #tpu.memory_space<vmem>>, %arg6: memref<128x128xf32, #tpu.memory_space<vmem>>, %arg7: memref<128x1xf32, #tpu.memory_space<vmem>>, %arg8: memref<128x1xf32, #tpu.memory_space<vmem>>) attributes {dimension_semantics = [#tpu.dimension_semantics<parallel>], iteration_bounds = array<i64: 2>, scalar_prefetch = 0 : i64, scratch_operands = 0 : i64, tpu.core_type = #tpu.core_type<tc>, window_params = [{transform_indices = @transform_0, window_bounds = array<i64: 128, 16>}, {pipeline_mode = #tpu.pipeline_mode<synchronous>, transform_indices = @transform_1, window_bounds = array<i64: 16, 256>}, {pipeline_mode = #tpu.pipeline_mode<synchronous>, transform_indices = @transform_2, window_bounds = array<i64: 1, 256>}, {pipeline_mode = #tpu.pipeline_mode<synchronous>, transform_indices = @transform_3, window_bounds = array<i64: 128, 1>}, {transform_indices = @transform_4, window_bounds = array<i64: 128, 128>}, {transform_indices = @transform_5, window_bounds = array<i64: 128, 128>}, {transform_indices = @transform_6, window_bounds = array<i64: 128, 1>}, {transform_indices = @transform_7, window_bounds = array<i64: 128, 1>}]} {
    %c0 = arith.constant 0 : index
    %c0_0 = arith.constant 0 : index
    %0 = vector.load %arg1[%c0, %c0_0] : memref<128x16xf32, #tpu.memory_space<vmem>>, vector<128x16xf32>
    %c0_1 = arith.constant 0 : index
    %c0_2 = arith.constant 0 : index
    %1 = vector.load %arg2[%c0_1, %c0_2] : memref<16x256xf32, #tpu.memory_space<vmem>>, vector<16x256xf32>
    %cst = arith.constant dense<0.000000e+00> : vector<128x256xf32>
    %2 = tpu.matmul %0, %1, %cst {dimension_numbers = #tpu.dot_dimension_numbers<[1], [0], [0], [1], [0, 0, 1, 1], [], []>} : vector<128x16xf32>, vector<16x256xf32>, vector<128x256xf32> -> vector<128x256xf32>
    %c0_3 = arith.constant 0 : index
    %c0_4 = arith.constant 0 : index
    %3 = vector.load %arg3[%c0_3, %c0_4] : memref<1x256xf32, #tpu.memory_space<vmem>>, vector<1x256xf32>
    %4 = vector.broadcast %3 : vector<1x256xf32> to vector<128x256xf32>
    %5 = arith.addf %2, %4 : vector<128x256xf32>
    %6 = vector.extract_strided_slice %5 {offsets = [0, 0], sizes = [128, 128], strides = [1, 1]} : vector<128x256xf32> to vector<128x128xf32>
    %7 = vector.extract_strided_slice %5 {offsets = [0, 128], sizes = [128, 128], strides = [1, 1]} : vector<128x256xf32> to vector<128x128xf32>
    %c0_5 = arith.constant 0 : index
    %c0_6 = arith.constant 0 : index
    %8 = vector.load %arg5[%c0_5, %c0_6] : memref<128x128xf32, #tpu.memory_space<vmem>>, vector<128x128xf32>
    tpu.vector_store %arg5[%c0_5, %c0_6], %6 {strides = array<i32>} : memref<128x128xf32, #tpu.memory_space<vmem>>, vector<128x128xf32>,
    %c0_7 = arith.constant 0 : index
    %c0_8 = arith.constant 0 : index
    %9 = vector.load %arg6[%c0_7, %c0_8] : memref<128x128xf32, #tpu.memory_space<vmem>>, vector<128x128xf32>
    tpu.vector_store %arg6[%c0_7, %c0_8], %7 {strides = array<i32>} : memref<128x128xf32, #tpu.memory_space<vmem>>, vector<128x128xf32>,
    %c0_9 = arith.constant 0 : index
    %c0_10 = arith.constant 0 : index
    %10 = vector.load %arg4[%c0_9, %c0_10] : memref<128x1xf32, #tpu.memory_space<vmem>>, vector<128x1xf32>
    %cst_11 = arith.constant dense<0.000000e+00> : vector<128x1xf32>
    %11 = tpu.matmul %6, %10, %cst_11 {dimension_numbers = #tpu.dot_dimension_numbers<[1], [0], [0], [1], [0, 0, 1, 1], [], []>} : vector<128x128xf32>, vector<128x1xf32>, vector<128x1xf32> -> vector<128x1xf32>
    %cst_12 = arith.constant 6.000000e-01 : f32
    %12 = vector.broadcast %cst_12 : f32 to vector<128x1xf32>
    %13 = arith.mulf %12, %11 : vector<128x1xf32>
    %c0_13 = arith.constant 0 : index
    %c0_14 = arith.constant 0 : index
    %14 = vector.load %arg7[%c0_13, %c0_14] : memref<128x1xf32, #tpu.memory_space<vmem>>, vector<128x1xf32>
    tpu.vector_store %arg7[%c0_13, %c0_14], %13 {strides = array<i32>} : memref<128x1xf32, #tpu.memory_space<vmem>>, vector<128x1xf32>,
    %cst_15 = arith.constant dense<0.000000e+00> : vector<128x1xf32>
    %15 = tpu.matmul %7, %10, %cst_15 {dimension_numbers = #tpu.dot_dimension_numbers<[1], [0], [0], [1], [0, 0, 1, 1], [], []>} : vector<128x128xf32>, vector<128x1xf32>, vector<128x1xf32> -> vector<128x1xf32>
    %cst_16 = arith.constant 6.000000e-01 : f32
    %16 = vector.broadcast %cst_16 : f32 to vector<128x1xf32>
    %17 = arith.mulf %16, %15 : vector<128x1xf32>
    %c0_17 = arith.constant 0 : index
    %c0_18 = arith.constant 0 : index
    %18 = vector.load %arg8[%c0_17, %c0_18] : memref<128x1xf32, #tpu.memory_space<vmem>>, vector<128x1xf32>
    tpu.vector_store %arg8[%c0_17, %c0_18], %17 {strides = array<i32>} : memref<128x1xf32, #tpu.memory_space<vmem>>, vector<128x1xf32>,
    return
  }
  func.func @transform_0(%arg0: i32) -> (i32, i32) {
    %c0_i32 = arith.constant 0 : i32
    %c0_i32_0 = arith.constant 0 : i32
    return %arg0, %c0_i32 : i32, i32
  }
  func.func @transform_1(%arg0: i32) -> (i32, i32) {
    %c0_i32 = arith.constant 0 : i32
    %c0_i32_0 = arith.constant 0 : i32
    %c0_i32_1 = arith.constant 0 : i32
    return %c0_i32, %c0_i32_0 : i32, i32
  }
  func.func @transform_2(%arg0: i32) -> (i32, i32) {
    %c0_i32 = arith.constant 0 : i32
    %c0_i32_0 = arith.constant 0 : i32
    %c0_i32_1 = arith.constant 0 : i32
    return %c0_i32, %c0_i32_0 : i32, i32
  }
  func.func @transform_3(%arg0: i32) -> (i32, i32) {
    %c0_i32 = arith.constant 0 : i32
    %c0_i32_0 = arith.constant 0 : i32
    %c0_i32_1 = arith.constant 0 : i32
    return %c0_i32, %c0_i32_0 : i32, i32
  }
  func.func @transform_4(%arg0: i32) -> (i32, i32) {
    %c0_i32 = arith.constant 0 : i32
    %c0_i32_0 = arith.constant 0 : i32
    return %arg0, %c0_i32 : i32, i32
  }
  func.func @transform_5(%arg0: i32) -> (i32, i32) {
    %c0_i32 = arith.constant 0 : i32
    %c0_i32_0 = arith.constant 0 : i32
    return %arg0, %c0_i32 : i32, i32
  }
  func.func @transform_6(%arg0: i32) -> (i32, i32) {
    %c0_i32 = arith.constant 0 : i32
    %c0_i32_0 = arith.constant 0 : i32
    return %arg0, %c0_i32 : i32, i32
  }
  func.func @transform_7(%arg0: i32) -> (i32, i32) {
    %c0_i32 = arith.constant 0 : i32
    %c0_i32_0 = arith.constant 0 : i32
    return %arg0, %c0_i32 : i32, i32
  }
}

</mosaic_0001>

<llo_original>
// kernel: tpu_custom_call.1
$region0: #{tpu_custom_call.1}
  #allocation0 [shape = 'u32[]', space=smem, size = 0x4, offset = 0x4, fixed_abs, tag = 'smem constant byte address 0x4 - core index']
  #allocation1 [shape = 'u32[144,128]{1,0:T(1,128)}', space=vmem, size = 0x12000, scoped, tag = 'internal scratch']
  %s0 = inlined_call_operand.vmem [shape: f32[256,16], index: 0, kind: input, shape index: {}]
  %s1 = inlined_call_operand.vmem [shape: f32[16,256], index: 1, kind: input, shape index: {}]
  %s2 = inlined_call_operand.vmem [shape: f32[1,256], index: 2, kind: input, shape index: {}]
  %s3 = inlined_call_operand.vmem [shape: f32[128,1], index: 3, kind: input, shape index: {}]
  %s4 = inlined_call_operand.hbm [shape: f32[256,128], index: 4, kind: output, shape index: {0}]
  %s5 = inlined_call_operand.hbm [shape: f32[256,128], index: 5, kind: output, shape index: {1}]
  %s6 = inlined_call_operand.vmem [shape: f32[256,1], index: 6, kind: output, shape index: {2}]
  %s7 = inlined_call_operand.vmem [shape: f32[256,1], index: 7, kind: output, shape index: {3}]
  %8 = xla_tuple %s4, %s5, %s6, %s7
  %s9 = sld [smem:[#allocation0]]
  $region73: #{tpu_custom_call.1} parent=0
    _
  %s11 = ssub.s32 1, %s9
  %s12 = scalar_select 0, %s11, %s9
  $region1: #{tpu_custom_call.1} parent=0
    #allocation2 [shape = 'u8[131072]{0}', space=vmem, size = 0x20000, scoped, tag = 'output window, operand 0']
    #allocation3 [shape = 's32[2]{0}', space=sflag, size = 0x8, scoped, tag = 'scoped memory for tpu_custom_call.1']
    #allocation4 [shape = 'u8[131072]{0}', space=vmem, size = 0x20000, scoped, tag = 'output window, operand 1']
    #allocation5 [shape = 's32[2]{0}', space=sflag, size = 0x8, scoped, tag = 'scoped memory for tpu_custom_call.1']
    %13 = vsyncpa [#allocation3], 0
    %s14 = scalar_lea.sflag [#allocation3], 1
    %15 = vsyncpa %s14, 0
    %16 = vsyncpa [#allocation5], 0
    %s17 = scalar_lea.sflag [#allocation5], 1
    %18 = vsyncpa %s17, 0
    loop: start=0, step=1, limit=4
    $region2: #{tpu_custom_call.1} parent=1 // loop_pre_header
      _
    $region3: #{tpu_custom_call.1} parent=1 // loop_header
      %s20 = sphi 0, %s24
      %p21 = scmp.ge.s32.totalorder %s20, 4
      %s30 = sphi 0, %s32
      %s33 = sphi 0, %s30
      %s34 = sphi 0, %s33
      %s50 = sphi 0, %s34
      %s54 = sphi 0, %s54
      %s56 = sphi 0, %s54
      %s57 = sphi 0, %s56
      %s71 = sphi 0, %s57
      %s75 = sphi 0, %s75
      %s77 = sphi 0, %s75
      %s78 = sphi 0, %s77
      %s92 = sphi 0, %s78
      %s96 = sphi 0, %s96
      %s98 = sphi 0, %s96
      %s99 = sphi 0, %s98
      %s113 = sphi 0, %s99
      %s119 = sphi 0, %s121
      %s122 = sphi 0, %s119
      %s123 = sphi 0, %s122
      %s139 = sphi 0, %s123
      %s145 = sphi 0, %s147
      %s148 = sphi 0, %s145
      %s149 = sphi 0, %s148
      %s165 = sphi 0, %s149
      %s171 = sphi 0, %s173
      %s174 = sphi 0, %s171
      %s175 = sphi 0, %s174
      %s191 = sphi 0, %s175
      %s197 = sphi 0, %s199
      %s200 = sphi 0, %s197
      %s201 = sphi 0, %s200
      %s217 = sphi 0, %s201
    $region4: #{tpu_custom_call.1} parent=1 // loop_header_branch
      %23 = sbr.rel (%p21) target = $region8
    $region5: #{tpu_custom_call.1} parent=1 // loop_body
      %s25 = ssub.s32 %s20, 1
      %s26 = ssub.s32 %s20, 2
      %s27 = sadd.s32 %s20, 1
      %s28 = ssub.s32 %s20, %s27
      %p29 = scmp.eq.s32.totalorder %s28, 0
      %s31 = sadd.s32 %s30, 1
      %s32 = scalar_select %p29, %s30, %s31
      %p35 = pneg %p29
      %p36 = scmp.eq.s32.totalorder %s20, 1
      %p37 = por %p35, %p36
      %p38 = scmp.ne.s32.totalorder %s30, %s33
      %p39 = scmp.eq.s32.totalorder %s20, 0
      %p40 = por %p38, %p39
      %p41 = scmp.ne.s32.totalorder %s30, %s33
      %p42 = scmp.eq.s32.totalorder %s25, 1
      %p43 = por %p41, %p42
      %p44 = scmp.ne.s32.totalorder %s33, %s34
      %p45 = scmp.eq.s32.totalorder %s25, 0
      %p46 = por %p44, %p45
      %p47 = scmp.ne.s32.totalorder %s33, %s34
      %p48 = scmp.eq.s32.totalorder %s26, 1
      %p49 = por %p47, %p48
      %p51 = scmp.ne.s32.totalorder %s34, %s50
      %p52 = scmp.eq.s32.totalorder %s26, 0
      %p53 = por %p51, %p52
      %s55 = sadd.s32 %s54, 1
      %p58 = scmp.eq.s32.totalorder %s20, 1
      %p59 = scmp.ne.s32.totalorder %s54, %s56
      %p60 = scmp.eq.s32.totalorder %s20, 0
      %p61 = por %p59, %p60
      %p62 = scmp.ne.s32.totalorder %s54, %s56
      %p63 = scmp.eq.s32.totalorder %s25, 1
      %p64 = por %p62, %p63
      %p65 = scmp.ne.s32.totalorder %s56, %s57
      %p66 = scmp.eq.s32.totalorder %s25, 0
      %p67 = por %p65, %p66
      %p68 = scmp.ne.s32.totalorder %s56, %s57
      %p69 = scmp.eq.s32.totalorder %s26, 1
      %p70 = por %p68, %p69
      %p72 = scmp.ne.s32.totalorder %s57, %s71
      %p73 = scmp.eq.s32.totalorder %s26, 0
      %p74 = por %p72, %p73
      %s76 = sadd.s32 %s75, 1
      %p79 = scmp.eq.s32.totalorder %s20, 1
      %p80 = scmp.ne.s32.totalorder %s75, %s77
      %p81 = scmp.eq.s32.totalorder %s20, 0
      %p82 = por %p80, %p81
      %p83 = scmp.ne.s32.totalorder %s75, %s77
      %p84 = scmp.eq.s32.totalorder %s25, 1
      %p85 = por %p83, %p84
      %p86 = scmp.ne.s32.totalorder %s77, %s78
      %p87 = scmp.eq.s32.totalorder %s25, 0
      %p88 = por %p86, %p87
      %p89 = scmp.ne.s32.totalorder %s77, %s78
      %p90 = scmp.eq.s32.totalorder %s26, 1
      %p91 = por %p89, %p90
      %p93 = scmp.ne.s32.totalorder %s78, %s92
      %p94 = scmp.eq.s32.totalorder %s26, 0
      %p95 = por %p93, %p94
      %s97 = sadd.s32 %s96, 1
      %p100 = scmp.eq.s32.totalorder %s20, 1
      %p101 = scmp.ne.s32.totalorder %s96, %s98
      %p102 = scmp.eq.s32.totalorder %s20, 0
      %p103 = por %p101, %p102
      %p104 = scmp.ne.s32.totalorder %s96, %s98
      %p105 = scmp.eq.s32.totalorder %s25, 1
      %p106 = por %p104, %p105
      %p107 = scmp.ne.s32.totalorder %s98, %s99
      %p108 = scmp.eq.s32.totalorder %s25, 0
      %p109 = por %p107, %p108
      %p110 = scmp.ne.s32.totalorder %s98, %s99
      %p111 = scmp.eq.s32.totalorder %s26, 1
      %p112 = por %p110, %p111
      %p114 = scmp.ne.s32.totalorder %s99, %s113
      %p115 = scmp.eq.s32.totalorder %s26, 0
      %p116 = por %p114, %p115
      %s117 = ssub.s32 %s20, %s27
      %p118 = scmp.eq.s32.totalorder %s117, 0
      %s120 = sadd.s32 %s119, 1
      %s121 = scalar_select %p118, %s119, %s120
      %p124 = pneg %p118
      %p125 = scmp.eq.s32.totalorder %s20, 1
      %p126 = por %p124, %p125
      %p127 = scmp.ne.s32.totalorder %s119, %s122
      %p128 = scmp.eq.s32.totalorder %s20, 0
      %p129 = por %p127, %p128
      %p130 = scmp.ne.s32.totalorder %s119, %s122
      %p131 = scmp.eq.s32.totalorder %s25, 1
      %p132 = por %p130, %p131
      %p133 = scmp.ne.s32.totalorder %s122, %s123
      %p134 = scmp.eq.s32.totalorder %s25, 0
      %p135 = por %p133, %p134
      %p136 = scmp.ne.s32.totalorder %s122, %s123
      %p137 = scmp.eq.s32.totalorder %s26, 1
      %p138 = por %p136, %p137
      %p140 = scmp.ne.s32.totalorder %s123, %s139
      %p141 = scmp.eq.s32.totalorder %s26, 0
      %p142 = por %p140, %p141
      %s143 = ssub.s32 %s20, %s27
      %p144 = scmp.eq.s32.totalorder %s143, 0
      %s146 = sadd.s32 %s145, 1
      %s147 = scalar_select %p144, %s145, %s146
      %p150 = pneg %p144
      %p151 = scmp.eq.s32.totalorder %s20, 1
      %p152 = por %p150, %p151
      %p153 = scmp.ne.s32.totalorder %s145, %s148
      %p154 = scmp.eq.s32.totalorder %s20, 0
      %p155 = por %p153, %p154
      %p156 = scmp.ne.s32.totalorder %s145, %s148
      %p157 = scmp.eq.s32.totalorder %s25, 1
      %p158 = por %p156, %p157
      %p159 = scmp.ne.s32.totalorder %s148, %s149
      %p160 = scmp.eq.s32.totalorder %s25, 0
      %p161 = por %p159, %p160
      %p162 = scmp.ne.s32.totalorder %s148, %s149
      %p163 = scmp.eq.s32.totalorder %s26, 1
      %p164 = por %p162, %p163
      %p166 = scmp.ne.s32.totalorder %s149, %s165
      %p167 = scmp.eq.s32.totalorder %s26, 0
      %p168 = por %p166, %p167
      %s169 = ssub.s32 %s20, %s27
      %p170 = scmp.eq.s32.totalorder %s169, 0
      %s172 = sadd.s32 %s171, 1
      %s173 = scalar_select %p170, %s171, %s172
      %p176 = pneg %p170
      %p177 = scmp.eq.s32.totalorder %s20, 1
      %p178 = por %p176, %p177
      %p179 = scmp.ne.s32.totalorder %s171, %s174
      %p180 = scmp.eq.s32.totalorder %s20, 0
      %p181 = por %p179, %p180
      %p182 = scmp.ne.s32.totalorder %s171, %s174
      %p183 = scmp.eq.s32.totalorder %s25, 1
      %p184 = por %p182, %p183
      %p185 = scmp.ne.s32.totalorder %s174, %s175
      %p186 = scmp.eq.s32.totalorder %s25, 0
      %p187 = por %p185, %p186
      %p188 = scmp.ne.s32.totalorder %s174, %s175
      %p189 = scmp.eq.s32.totalorder %s26, 1
      %p190 = por %p188, %p189
      %p192 = scmp.ne.s32.totalorder %s175, %s191
      %p193 = scmp.eq.s32.totalorder %s26, 0
      %p194 = por %p192, %p193
      %s195 = ssub.s32 %s20, %s27
      %p196 = scmp.eq.s32.totalorder %s195, 0
      %s198 = sadd.s32 %s197, 1
      %s199 = scalar_select %p196, %s197, %s198
      %p202 = pneg %p196
      %p203 = scmp.eq.s32.totalorder %s20, 1
      %p204 = por %p202, %p203
      %p205 = scmp.ne.s32.totalorder %s197, %s200
      %p206 = scmp.eq.s32.totalorder %s20, 0
      %p207 = por %p205, %p206
      %p208 = scmp.ne.s32.totalorder %s197, %s200
      %p209 = scmp.eq.s32.totalorder %s25, 1
      %p210 = por %p208, %p209
      %p211 = scmp.ne.s32.totalorder %s200, %s201
      %p212 = scmp.eq.s32.totalorder %s25, 0
      %p213 = por %p211, %p212
      %p214 = scmp.ne.s32.totalorder %s200, %s201
      %p215 = scmp.eq.s32.totalorder %s26, 1
      %p216 = por %p214, %p215
      %p218 = scmp.ne.s32.totalorder %s201, %s217
      %p219 = scmp.eq.s32.totalorder %s26, 0
      %p220 = por %p218, %p219
      %p221 = scmp.le.s32.totalorder 1, %s20
      %p222 = scmp.lt.s32.totalorder %s20, 3
      %p223 = pnand %p221, %p222
      %p224 = pneg %p223
      // Predicated region
      $region9: #{tpu_custom_call.1} parent=5 // pred_check
        _
      $region10: #{tpu_custom_call.1} parent=5 // pred_check_branch
        %226 = sbr.rel (%p223) target = $region12
      $region11: #{tpu_custom_call.1} parent=5 // pred_region
        %s227 = ssub.s32 %s20, 1
        // Predicated region
        $region13: #{tpu_custom_call.1} parent=11 // pred_check
          %p228 = pneg %p67
        $region14: #{tpu_custom_call.1} parent=11 // pred_check_branch
          %230 = sbr.rel (%p228) target = $region16
        $region15: #{tpu_custom_call.1} parent=11 // pred_region
          _
        $region16: #{tpu_custom_call.1} parent=11 // pred_fallthru
          _
        // Predicated region
        $region17: #{tpu_custom_call.1} parent=11 // pred_check
          %p231 = pneg %p88
        $region18: #{tpu_custom_call.1} parent=11 // pred_check_branch
          %233 = sbr.rel (%p231) target = $region20
        $region19: #{tpu_custom_call.1} parent=11 // pred_region
          _
        $region20: #{tpu_custom_call.1} parent=11 // pred_fallthru
          _
        // Predicated region
        $region21: #{tpu_custom_call.1} parent=11 // pred_check
          %p234 = pneg %p109
        $region22: #{tpu_custom_call.1} parent=11 // pred_check_branch
          %236 = sbr.rel (%p234) target = $region24
        $region23: #{tpu_custom_call.1} parent=11 // pred_region
          _
        $region24: #{tpu_custom_call.1} parent=11 // pred_fallthru
          _
      $region12: #{tpu_custom_call.1} parent=5 // pred_fallthru
        _
      %p237 = scmp.lt.s32.totalorder %s20, 2
      // Predicated region
      $region25: #{tpu_custom_call.1} parent=5 // pred_check
        %p238 = pneg %p237
      $region26: #{tpu_custom_call.1} parent=5 // pred_check_branch
        %240 = sbr.rel (%p238) target = $region28
      $region27: #{tpu_custom_call.1} parent=5 // pred_region
        // Predicated region
        $region29: #{tpu_custom_call.1} parent=27 // pred_check
          %p241 = pneg %p40
        $region30: #{tpu_custom_call.1} parent=27 // pred_check_branch
          %243 = sbr.rel (%p241) target = $region32
        $region31: #{tpu_custom_call.1} parent=27 // pred_region
          %s244 = smul.u32 16, %s20
          %p245 = scmp.lt.s32.totalorder %s244, 31
          %s246 = scalar_select %p245, %s244, 31
          %s247 = smul.addr %s246, 8
          %s248 = scalar_lea.vmem %s0, %s247
          %s249 = smul.u32 16, %s20
        $region32: #{tpu_custom_call.1} parent=27 // pred_fallthru
          _
      $region28: #{tpu_custom_call.1} parent=5 // pred_fallthru
        _
      %p250 = scmp.le.s32.totalorder 1, %s20
      %p251 = scmp.lt.s32.totalorder %s20, 3
      %p252 = pnand %p250, %p251
      %p253 = pneg %p252
      // Predicated region
      $region33: #{tpu_custom_call.1} parent=5 // pred_check
        _
      $region34: #{tpu_custom_call.1} parent=5 // pred_check_branch
        %255 = sbr.rel (%p252) target = $region36
      $region35: #{tpu_custom_call.1} parent=5 // pred_region
        %s256 = ssub.s32 %s20, 1
        %s257 = smul.u32 16, %s25
        %p258 = scmp.lt.s32.totalorder %s257, 31
        %s259 = scalar_select %p258, %s257, 31
        %s260 = smul.addr %s259, 8
        %s261 = scalar_lea.vmem %s0, %s260
        %p262 = pneg %p46
        %p263 = pneg %p43
        %p264 = pneg %p67
        %p265 = pneg %p64
        %p266 = pneg %p88
        %p267 = pneg %p85
        %p268 = pneg %p109
        %p269 = pneg %p106
        %p270 = pneg %p135
        %p271 = pneg %p132
        %s272 = sand.u32 %s122, 1
        %s273 = scalar_lea.sflag [#allocation3], %s272
        %s274 = sand.u32 %s122, 1
        %s275 = smul.addr %s274, 128
        %s276 = scalar_lea.vmem [#allocation2], %s275
        %p277 = pneg %p161
        %p278 = pneg %p158
        %s279 = sand.u32 %s148, 1
        %s280 = scalar_lea.sflag [#allocation5], %s279
        %s281 = sand.u32 %s148, 1
        %s282 = smul.addr %s281, 128
        %s283 = scalar_lea.vmem [#allocation4], %s282
        %p284 = pneg %p187
        %p285 = pneg %p184
        %s286 = smul.u32 16, %s25
        %p287 = scmp.lt.s32.totalorder %s286, 31
        %s288 = scalar_select %p287, %s286, 31
        %s289 = smul.addr %s288, 8
        %s290 = scalar_lea.vmem %s6, %s289
        %p291 = pneg %p213
        %p292 = pneg %p210
        %s293 = smul.u32 16, %s25
        %p294 = scmp.lt.s32.totalorder %s293, 31
        %s295 = scalar_select %p294, %s293, 31
        %s296 = smul.addr %s295, 8
        %s297 = scalar_lea.vmem %s7, %s296
        %s298 = smul.u32 16, %s25
        %p299 = scmp.lt.s32.totalorder %s298, 31
        %s300 = scalar_select %p299, %s298, 31
        %s301 = smul.addr %s300, 8
        %s302 = scalar_lea.vmem %s0, %s301
        %s303 = smul.u32 16, %s25
        %s304 = smul.u32 16, %s25
        %s305 = smul.u32 16, %s25
        %s306 = smul.u32 16, %s25
        %p307 = scmp.lt.s32.totalorder %s306, 31
        %s308 = scalar_select %p307, %s306, 31
        %s309 = smul.addr %s308, 8
        %s310 = scalar_lea.vmem %s6, %s309
        %s311 = smul.u32 16, %s25
        %s312 = smul.u32 16, %s25
        %p313 = scmp.lt.s32.totalorder %s312, 31
        %s314 = scalar_select %p313, %s312, 31
        %s315 = smul.addr %s314, 8
        %s316 = scalar_lea.vmem %s7, %s315
        %s317 = smul.u32 16, %s25
        %v318 = vld [vmem:[%s302] sm:$0xff]
        %v319 = vld [vmem:[%s302 + $0x8] sm:$0xff]
        %v320 = vld [vmem:[%s302 + $0x10] sm:$0xff]
        %v321 = vld [vmem:[%s302 + $0x18] sm:$0xff]
        %v322 = vld [vmem:[%s302 + $0x20] sm:$0xff]
        %v323 = vld [vmem:[%s302 + $0x28] sm:$0xff]
        %v324 = vld [vmem:[%s302 + $0x30] sm:$0xff]
        %v325 = vld [vmem:[%s302 + $0x38] sm:$0xff]
        %v326 = vld [vmem:[%s302 + $0x40] sm:$0xff]
        %v327 = vld [vmem:[%s302 + $0x48] sm:$0xff]
        %v328 = vld [vmem:[%s302 + $0x50] sm:$0xff]
        %v329 = vld [vmem:[%s302 + $0x58] sm:$0xff]
        %v330 = vld [vmem:[%s302 + $0x60] sm:$0xff]
        %v331 = vld [vmem:[%s302 + $0x68] sm:$0xff]
        %v332 = vld [vmem:[%s302 + $0x70] sm:$0xff]
        %v333 = vld [vmem:[%s302 + $0x78] sm:$0xff]
        %v334 = vld [vmem:[%s1] sm:$0xff]
        %v335 = vld [vmem:[%s1 + $0x8] sm:$0xff]
        %v336 = vld [vmem:[%s1 + $0x10] sm:$0xff]
        %v337 = vld [vmem:[%s1 + $0x18] sm:$0xff]
        %v338 = vld [vmem:[%s2] sm:$0x3]
        %v340 = vlaneseq
        %v341 = vshrl.u32 %v340, 7
        %v342 = vsub.s32 0, %v341
        %v343 = vrot.slane %v338, %v342
        %v344 = vlaneseq
        %v345 = vshrl.u32 %v344, 7
        %v346 = vsub.s32 1, %v345
        %v347 = vrot.slane %v338, %v346
        %vm350 = vcmask 130048
        %v352 = vsel %vm350, %v318, 0
        %v355 = vsel %vm350, %v319, 0
        %v358 = vsel %vm350, %v320, 0
        %v361 = vsel %vm350, %v321, 0
        %v364 = vsel %vm350, %v322, 0
        %v367 = vsel %vm350, %v323, 0
        %v370 = vsel %vm350, %v324, 0
        %v373 = vsel %vm350, %v325, 0
        %v376 = vsel %vm350, %v326, 0
        %v379 = vsel %vm350, %v327, 0
        %v382 = vsel %vm350, %v328, 0
        %v385 = vsel %vm350, %v329, 0
        %v388 = vsel %vm350, %v330, 0
        %v391 = vsel %vm350, %v331, 0
        %v394 = vsel %vm350, %v332, 0
        %v397 = vsel %vm350, %v333, 0
        %399 = vmatprep.subr.mxu0 0.0
        %400 = vmatpush1.msra.mxu0 0.0
        %401 = vmatprep.subr.mxu0 0.0
        %402 = vmatpush1.msra.mxu0 0.0
        %403 = vmatprep.subr.mxu0 0.0
        %404 = vmatpush1.msra.mxu0 0.0
        %405 = vmatprep.subr.mxu0 0.0
        %406 = vmatpush1.msra.mxu0 0.0
        %407 = vmatprep.subr.mxu0 0.0
        %408 = vmatpush1.msra.mxu0 0.0
        %409 = vmatprep.subr.mxu0 0.0
        %410 = vmatpush1.msra.mxu0 0.0
        %411 = vmatprep.subr.mxu0 0.0
        %412 = vmatpush1.msra.mxu0 0.0
        %413 = vmatprep.subr.mxu0 0.0
        %414 = vmatpush1.msra.mxu0 0.0
        %415 = vmatprep.subr.mxu0 0.0
        %416 = vmatpush1.msra.mxu0 0.0
        %417 = vmatprep.subr.mxu0 0.0
        %418 = vmatpush1.msra.mxu0 0.0
        %419 = vmatprep.subr.mxu0 0.0
        %420 = vmatpush1.msra.mxu0 0.0
        %421 = vmatprep.subr.mxu0 0.0
        %422 = vmatpush1.msra.mxu0 0.0
        %423 = vmatprep.subr.mxu0 0.0
        %424 = vmatpush1.msra.mxu0 0.0
        %425 = vmatprep.subr.mxu0 0.0
        %426 = vmatpush1.msra.mxu0 0.0
        %427 = vmatprep.subr.mxu0 %v337
        %428 = vmatpush1.msra.mxu0 %v336
        %429 = vmatprep.subr.mxu0 %v335
        %430 = vmatpush1.msra.mxu0 %v334
        %431 = vmatprep.subr.mxu0 0.0
        %432 = vmatpush2.msra.mxu0 0.0
        %433 = vmatprep.subr.mxu0 0.0
        %434 = vmatpush2.msra.mxu0 0.0
        %435 = vmatprep.subr.mxu0 0.0
        %436 = vmatpush2.msra.mxu0 0.0
        %437 = vmatprep.subr.mxu0 0.0
        %438 = vmatpush2.msra.mxu0 0.0
        %439 = vmatprep.subr.mxu0 0.0
        %440 = vmatpush2.msra.mxu0 0.0
        %441 = vmatprep.subr.mxu0 0.0
        %442 = vmatpush2.msra.mxu0 0.0
        %443 = vmatprep.subr.mxu0 0.0
        %444 = vmatpush2.msra.mxu0 0.0
        %445 = vmatprep.subr.mxu0 0.0
        %446 = vmatpush2.msra.mxu0 0.0
        %447 = vmatprep.subr.mxu0 0.0
        %448 = vmatpush2.msra.mxu0 0.0
        %449 = vmatprep.subr.mxu0 0.0
        %450 = vmatpush2.msra.mxu0 0.0
        %451 = vmatprep.subr.mxu0 0.0
        %452 = vmatpush2.msra.mxu0 0.0
        %453 = vmatprep.subr.mxu0 0.0
        %454 = vmatpush2.msra.mxu0 0.0
        %455 = vmatprep.subr.mxu0 0.0
        %456 = vmatpush2.msra.mxu0 0.0
        %457 = vmatprep.subr.mxu0 0.0
        %458 = vmatpush2.msra.mxu0 0.0
        %459 = vmatprep.subr.mxu0 0.0
        %460 = vmatpush2.msra.mxu0 0.0
        %461 = vmatprep.subr.mxu0 0.0
        %462 = vmatpush2.msra.mxu0 0.0
        %463 = vmatprep.mubr.f32.mxu0 0.0
        %464 = vmatmul.mubr.f32.gmra.mxu0 %v352
        %v465 = vpop.f32.mrf.mxu0
        %v466 = vadd.f32 %v343, %v465
        %v467 = vpop.f32.mrf.mxu0
        %v468 = vadd.f32 %v347, %v467
        %469 = vmatprep.mubr.f32.mxu0 0.0
        %470 = vmatmul.mubr.f32.gmra.mxu0 %v355
        %v471 = vpop.f32.mrf.mxu0
        %v472 = vadd.f32 %v343, %v471
        %v473 = vpop.f32.mrf.mxu0
        %v474 = vadd.f32 %v347, %v473
        %475 = vmatprep.mubr.f32.mxu0 0.0
        %476 = vmatmul.mubr.f32.gmra.mxu0 %v358
        %v477 = vpop.f32.mrf.mxu0
        %v478 = vadd.f32 %v343, %v477
        %v479 = vpop.f32.mrf.mxu0
        %v480 = vadd.f32 %v347, %v479
        %481 = vmatprep.mubr.f32.mxu0 0.0
        %482 = vmatmul.mubr.f32.gmra.mxu0 %v361
        %v483 = vpop.f32.mrf.mxu0
        %v484 = vadd.f32 %v343, %v483
        %v485 = vpop.f32.mrf.mxu0
        %v486 = vadd.f32 %v347, %v485
        %487 = vmatprep.mubr.f32.mxu0 0.0
        %488 = vmatmul.mubr.f32.gmra.mxu0 %v364
        %v489 = vpop.f32.mrf.mxu0
        %v490 = vadd.f32 %v343, %v489
        %v491 = vpop.f32.mrf.mxu0
        %v492 = vadd.f32 %v347, %v491
        %493 = vmatprep.mubr.f32.mxu0 0.0
        %494 = vmatmul.mubr.f32.gmra.mxu0 %v367
        %v495 = vpop.f32.mrf.mxu0
        %v496 = vadd.f32 %v343, %v495
        %v497 = vpop.f32.mrf.mxu0
        %v498 = vadd.f32 %v347, %v497
        %499 = vmatprep.mubr.f32.mxu0 0.0
        %500 = vmatmul.mubr.f32.gmra.mxu0 %v370
        %v501 = vpop.f32.mrf.mxu0
        %v502 = vadd.f32 %v343, %v501
        %v503 = vpop.f32.mrf.mxu0
        %v504 = vadd.f32 %v347, %v503
        %505 = vmatprep.mubr.f32.mxu0 0.0
        %506 = vmatmul.mubr.f32.gmra.mxu0 %v373
        %v507 = vpop.f32.mrf.mxu0
        %v508 = vadd.f32 %v343, %v507
        %v509 = vpop.f32.mrf.mxu0
        %v510 = vadd.f32 %v347, %v509
        %511 = vmatprep.mubr.f32.mxu0 0.0
        %512 = vmatmul.mubr.f32.gmra.mxu0 %v376
        %v513 = vpop.f32.mrf.mxu0
        %v514 = vadd.f32 %v343, %v513
        %v515 = vpop.f32.mrf.mxu0
        %v516 = vadd.f32 %v347, %v515
        %517 = vmatprep.mubr.f32.mxu0 0.0
        %518 = vmatmul.mubr.f32.gmra.mxu0 %v379
        %v519 = vpop.f32.mrf.mxu0
        %v520 = vadd.f32 %v343, %v519
        %v521 = vpop.f32.mrf.mxu0
        %v522 = vadd.f32 %v347, %v521
        %523 = vmatprep.mubr.f32.mxu0 0.0
        %524 = vmatmul.mubr.f32.gmra.mxu0 %v382
        %v525 = vpop.f32.mrf.mxu0
        %v526 = vadd.f32 %v343, %v525
        %v527 = vpop.f32.mrf.mxu0
        %v528 = vadd.f32 %v347, %v527
        %529 = vmatprep.mubr.f32.mxu0 0.0
        %530 = vmatmul.mubr.f32.gmra.mxu0 %v385
        %v531 = vpop.f32.mrf.mxu0
        %v532 = vadd.f32 %v343, %v531
        %v533 = vpop.f32.mrf.mxu0
        %v534 = vadd.f32 %v347, %v533
        %535 = vmatprep.mubr.f32.mxu0 0.0
        %536 = vmatmul.mubr.f32.gmra.mxu0 %v388
        %v537 = vpop.f32.mrf.mxu0
        %v538 = vadd.f32 %v343, %v537
        %v539 = vpop.f32.mrf.mxu0
        %v540 = vadd.f32 %v347, %v539
        %541 = vmatprep.mubr.f32.mxu0 0.0
        %542 = vmatmul.mubr.f32.gmra.mxu0 %v391
        %v543 = vpop.f32.mrf.mxu0
        %v544 = vadd.f32 %v343, %v543
        %v545 = vpop.f32.mrf.mxu0
        %v546 = vadd.f32 %v347, %v545
        %547 = vmatprep.mubr.f32.mxu0 0.0
        %548 = vmatmul.mubr.f32.gmra.mxu0 %v394
        %v549 = vpop.f32.mrf.mxu0
        %v550 = vadd.f32 %v343, %v549
        %v551 = vpop.f32.mrf.mxu0
        %v552 = vadd.f32 %v347, %v551
        %553 = vmatprep.mubr.f32.mxu0 0.0
        %554 = vmatmul.mubr.f32.gmra.mxu0 %v397
        %v555 = vpop.f32.mrf.mxu0
        %v556 = vadd.f32 %v343, %v555
        %v557 = vpop.f32.mrf.mxu0
        %v558 = vadd.f32 %v347, %v557
        %559 = vdwg.mxu0
        %560 = vst [vmem:[%s276] sm:$0xff] %v466
        %561 = vst [vmem:[%s276 + $0x8] sm:$0xff] %v472
        %562 = vst [vmem:[%s276 + $0x10] sm:$0xff] %v478
        %563 = vst [vmem:[%s276 + $0x18] sm:$0xff] %v484
        %564 = vst [vmem:[%s276 + $0x20] sm:$0xff] %v490
        %565 = vst [vmem:[%s276 + $0x28] sm:$0xff] %v496
        %566 = vst [vmem:[%s276 + $0x30] sm:$0xff] %v502
        %567 = vst [vmem:[%s276 + $0x38] sm:$0xff] %v508
        %568 = vst [vmem:[%s276 + $0x40] sm:$0xff] %v514
        %569 = vst [vmem:[%s276 + $0x48] sm:$0xff] %v520
        %570 = vst [vmem:[%s276 + $0x50] sm:$0xff] %v526
        %571 = vst [vmem:[%s276 + $0x58] sm:$0xff] %v532
        %572 = vst [vmem:[%s276 + $0x60] sm:$0xff] %v538
        %573 = vst [vmem:[%s276 + $0x68] sm:$0xff] %v544
        %574 = vst [vmem:[%s276 + $0x70] sm:$0xff] %v550
        %575 = vst [vmem:[%s276 + $0x78] sm:$0xff] %v556
        %576 = vst [vmem:[%s283] sm:$0xff] %v468
        %577 = vst [vmem:[%s283 + $0x8] sm:$0xff] %v474
        %578 = vst [vmem:[%s283 + $0x10] sm:$0xff] %v480
        %579 = vst [vmem:[%s283 + $0x18] sm:$0xff] %v486
        %580 = vst [vmem:[%s283 + $0x20] sm:$0xff] %v492
        %581 = vst [vmem:[%s283 + $0x28] sm:$0xff] %v498
        %582 = vst [vmem:[%s283 + $0x30] sm:$0xff] %v504
        %583 = vst [vmem:[%s283 + $0x38] sm:$0xff] %v510
        %584 = vst [vmem:[%s283 + $0x40] sm:$0xff] %v516
        %585 = vst [vmem:[%s283 + $0x48] sm:$0xff] %v522
        %586 = vst [vmem:[%s283 + $0x50] sm:$0xff] %v528
        %587 = vst [vmem:[%s283 + $0x58] sm:$0xff] %v534
        %588 = vst [vmem:[%s283 + $0x60] sm:$0xff] %v540
        %589 = vst [vmem:[%s283 + $0x68] sm:$0xff] %v546
        %590 = vst [vmem:[%s283 + $0x70] sm:$0xff] %v552
        %591 = vst [vmem:[%s283 + $0x78] sm:$0xff] %v558
        %v592 = vld [vmem:[%s3] sm:$0xff]
        %v593 = vld [vmem:[%s3 + $0x8] sm:$0xff]
        %v594 = vld [vmem:[%s3 + $0x10] sm:$0xff]
        %v595 = vld [vmem:[%s3 + $0x18] sm:$0xff]
        %v596 = vld [vmem:[%s3 + $0x20] sm:$0xff]
        %v597 = vld [vmem:[%s3 + $0x28] sm:$0xff]
        %v598 = vld [vmem:[%s3 + $0x30] sm:$0xff]
        %v599 = vld [vmem:[%s3 + $0x38] sm:$0xff]
        %v600 = vld [vmem:[%s3 + $0x40] sm:$0xff]
        %v601 = vld [vmem:[%s3 + $0x48] sm:$0xff]
        %v602 = vld [vmem:[%s3 + $0x50] sm:$0xff]
        %v603 = vld [vmem:[%s3 + $0x58] sm:$0xff]
        %v604 = vld [vmem:[%s3 + $0x60] sm:$0xff]
        %v605 = vld [vmem:[%s3 + $0x68] sm:$0xff]
        %v606 = vld [vmem:[%s3 + $0x70] sm:$0xff]
        %v607 = vld [vmem:[%s3 + $0x78] sm:$0xff]
        %608 = vmatprep.subr.mxu0 0.0
        %609 = vmatpush1.msra.mxu0 %v607
        %610 = vmatprep.subr.mxu0 0.0
        %611 = vmatpush1.msra.mxu0 %v606
        %612 = vmatprep.subr.mxu0 0.0
        %613 = vmatpush1.msra.mxu0 %v605
        %614 = vmatprep.subr.mxu0 0.0
        %615 = vmatpush1.msra.mxu0 %v604
        %616 = vmatprep.subr.mxu0 0.0
        %617 = vmatpush1.msra.mxu0 %v603
        %618 = vmatprep.subr.mxu0 0.0
        %619 = vmatpush1.msra.mxu0 %v602
        %620 = vmatprep.subr.mxu0 0.0
        %621 = vmatpush1.msra.mxu0 %v601
        %622 = vmatprep.subr.mxu0 0.0
        %623 = vmatpush1.msra.mxu0 %v600
        %624 = vmatprep.subr.mxu0 0.0
        %625 = vmatpush1.msra.mxu0 %v599
        %626 = vmatprep.subr.mxu0 0.0
        %627 = vmatpush1.msra.mxu0 %v598
        %628 = vmatprep.subr.mxu0 0.0
        %629 = vmatpush1.msra.mxu0 %v597
        %630 = vmatprep.subr.mxu0 0.0
        %631 = vmatpush1.msra.mxu0 %v596
        %632 = vmatprep.subr.mxu0 0.0
        %633 = vmatpush1.msra.mxu0 %v595
        %634 = vmatprep.subr.mxu0 0.0
        %635 = vmatpush1.msra.mxu0 %v594
        %636 = vmatprep.subr.mxu0 0.0
        %637 = vmatpush1.msra.mxu0 %v593
        %638 = vmatprep.subr.mxu0 0.0
        %639 = vmatpush1.msra.mxu0 %v592
        %640 = vmatprep.subr.mxu0 0.0
        %641 = vmatpush2.msra.mxu0 0.0
        %642 = vmatprep.subr.mxu0 0.0
        %643 = vmatpush2.msra.mxu0 0.0
        %644 = vmatprep.subr.mxu0 0.0
        %645 = vmatpush2.msra.mxu0 0.0
        %646 = vmatprep.subr.mxu0 0.0
        %647 = vmatpush2.msra.mxu0 0.0
        %648 = vmatprep.subr.mxu0 0.0
        %649 = vmatpush2.msra.mxu0 0.0
        %650 = vmatprep.subr.mxu0 0.0
        %651 = vmatpush2.msra.mxu0 0.0
        %652 = vmatprep.subr.mxu0 0.0
        %653 = vmatpush2.msra.mxu0 0.0
        %654 = vmatprep.subr.mxu0 0.0
        %655 = vmatpush2.msra.mxu0 0.0
        %656 = vmatprep.subr.mxu0 0.0
        %657 = vmatpush2.msra.mxu0 0.0
        %658 = vmatprep.subr.mxu0 0.0
        %659 = vmatpush2.msra.mxu0 0.0
        %660 = vmatprep.subr.mxu0 0.0
        %661 = vmatpush2.msra.mxu0 0.0
        %662 = vmatprep.subr.mxu0 0.0
        %663 = vmatpush2.msra.mxu0 0.0
        %664 = vmatprep.subr.mxu0 0.0
        %665 = vmatpush2.msra.mxu0 0.0
        %666 = vmatprep.subr.mxu0 0.0
        %667 = vmatpush2.msra.mxu0 0.0
        %668 = vmatprep.subr.mxu0 0.0
        %669 = vmatpush2.msra.mxu0 0.0
        %670 = vmatprep.subr.mxu0 0.0
        %671 = vmatpush2.msra.mxu0 0.0
        %672 = vmatprep.mubr.f32.mxu0 0.0
        %673 = vmatmul.mubr.f32.gmra.mxu0 %v466
        %v674 = vpop.f32.mrf.mxu0
        %v675 = vadd.f32 0.0, %v674
        %v676 = vpop.f32.mrf.mxu0
        %677 = vmatprep.mubr.f32.mxu0 0.0
        %678 = vmatmul.mubr.f32.gmra.mxu0 %v472
        %v679 = vpop.f32.mrf.mxu0
        %v680 = vadd.f32 0.0, %v679
        %v681 = vpop.f32.mrf.mxu0
        %682 = vmatprep.mubr.f32.mxu0 0.0
        %683 = vmatmul.mubr.f32.gmra.mxu0 %v478
        %v684 = vpop.f32.mrf.mxu0
        %v685 = vadd.f32 0.0, %v684
        %v686 = vpop.f32.mrf.mxu0
        %687 = vmatprep.mubr.f32.mxu0 0.0
        %688 = vmatmul.mubr.f32.gmra.mxu0 %v484
        %v689 = vpop.f32.mrf.mxu0
        %v690 = vadd.f32 0.0, %v689
        %v691 = vpop.f32.mrf.mxu0
        %692 = vmatprep.mubr.f32.mxu0 0.0
        %693 = vmatmul.mubr.f32.gmra.mxu0 %v490
        %v694 = vpop.f32.mrf.mxu0
        %v695 = vadd.f32 0.0, %v694
        %v696 = vpop.f32.mrf.mxu0
        %697 = vmatprep.mubr.f32.mxu0 0.0
        %698 = vmatmul.mubr.f32.gmra.mxu0 %v496
        %v699 = vpop.f32.mrf.mxu0
        %v700 = vadd.f32 0.0, %v699
        %v701 = vpop.f32.mrf.mxu0
        %702 = vmatprep.mubr.f32.mxu0 0.0
        %703 = vmatmul.mubr.f32.gmra.mxu0 %v502
        %v704 = vpop.f32.mrf.mxu0
        %v705 = vadd.f32 0.0, %v704
        %v706 = vpop.f32.mrf.mxu0
        %707 = vmatprep.mubr.f32.mxu0 0.0
        %708 = vmatmul.mubr.f32.gmra.mxu0 %v508
        %v709 = vpop.f32.mrf.mxu0
        %v710 = vadd.f32 0.0, %v709
        %v711 = vpop.f32.mrf.mxu0
        %712 = vmatprep.mubr.f32.mxu0 0.0
        %713 = vmatmul.mubr.f32.gmra.mxu0 %v514
        %v714 = vpop.f32.mrf.mxu0
        %v715 = vadd.f32 0.0, %v714
        %v716 = vpop.f32.mrf.mxu0
        %717 = vmatprep.mubr.f32.mxu0 0.0
        %718 = vmatmul.mubr.f32.gmra.mxu0 %v520
        %v719 = vpop.f32.mrf.mxu0
        %v720 = vadd.f32 0.0, %v719
        %v721 = vpop.f32.mrf.mxu0
        %722 = vmatprep.mubr.f32.mxu0 0.0
        %723 = vmatmul.mubr.f32.gmra.mxu0 %v526
        %v724 = vpop.f32.mrf.mxu0
        %v725 = vadd.f32 0.0, %v724
        %v726 = vpop.f32.mrf.mxu0
        %727 = vmatprep.mubr.f32.mxu0 0.0
        %728 = vmatmul.mubr.f32.gmra.mxu0 %v532
        %v729 = vpop.f32.mrf.mxu0
        %v730 = vadd.f32 0.0, %v729
        %v731 = vpop.f32.mrf.mxu0
        %732 = vmatprep.mubr.f32.mxu0 0.0
        %733 = vmatmul.mubr.f32.gmra.mxu0 %v538
        %v734 = vpop.f32.mrf.mxu0
        %v735 = vadd.f32 0.0, %v734
        %v736 = vpop.f32.mrf.mxu0
        %737 = vmatprep.mubr.f32.mxu0 0.0
        %738 = vmatmul.mubr.f32.gmra.mxu0 %v544
        %v739 = vpop.f32.mrf.mxu0
        %v740 = vadd.f32 0.0, %v739
        %v741 = vpop.f32.mrf.mxu0
        %742 = vmatprep.mubr.f32.mxu0 0.0
        %743 = vmatmul.mubr.f32.gmra.mxu0 %v550
        %v744 = vpop.f32.mrf.mxu0
        %v745 = vadd.f32 0.0, %v744
        %v746 = vpop.f32.mrf.mxu0
        %747 = vmatprep.mubr.f32.mxu0 0.0
        %748 = vmatmul.mubr.f32.gmra.mxu0 %v556
        %v749 = vpop.f32.mrf.mxu0
        %v750 = vadd.f32 0.0, %v749
        %v751 = vpop.f32.mrf.mxu0
        %752 = vdwg.mxu0
        %v753 = vmul.f32 %v675, 0.6
        %v754 = vmul.f32 %v680, 0.6
        %v755 = vmul.f32 %v685, 0.6
        %v756 = vmul.f32 %v690, 0.6
        %v757 = vmul.f32 %v695, 0.6
        %v758 = vmul.f32 %v700, 0.6
        %v759 = vmul.f32 %v705, 0.6
        %v760 = vmul.f32 %v710, 0.6
        %v761 = vmul.f32 %v715, 0.6
        %v762 = vmul.f32 %v720, 0.6
        %v763 = vmul.f32 %v725, 0.6
        %v764 = vmul.f32 %v730, 0.6
        %v765 = vmul.f32 %v735, 0.6
        %v766 = vmul.f32 %v740, 0.6
        %v767 = vmul.f32 %v745, 0.6
        %v768 = vmul.f32 %v750, 0.6
        %vm769 = vcmask 7168
        %770 = vst.msk [vmem:[%s310] sm:$0xff] %vm769, %v753
        %771 = vst.msk [vmem:[%s310 + $0x8] sm:$0xff] %vm769, %v754
        %772 = vst.msk [vmem:[%s310 + $0x10] sm:$0xff] %vm769, %v755
        %773 = vst.msk [vmem:[%s310 + $0x18] sm:$0xff] %vm769, %v756
        %774 = vst.msk [vmem:[%s310 + $0x20] sm:$0xff] %vm769, %v757
        %775 = vst.msk [vmem:[%s310 + $0x28] sm:$0xff] %vm769, %v758
        %776 = vst.msk [vmem:[%s310 + $0x30] sm:$0xff] %vm769, %v759
        %777 = vst.msk [vmem:[%s310 + $0x38] sm:$0xff] %vm769, %v760
        %778 = vst.msk [vmem:[%s310 + $0x40] sm:$0xff] %vm769, %v761
        %779 = vst.msk [vmem:[%s310 + $0x48] sm:$0xff] %vm769, %v762
        %780 = vst.msk [vmem:[%s310 + $0x50] sm:$0xff] %vm769, %v763
        %781 = vst.msk [vmem:[%s310 + $0x58] sm:$0xff] %vm769, %v764
        %782 = vst.msk [vmem:[%s310 + $0x60] sm:$0xff] %vm769, %v765
        %783 = vst.msk [vmem:[%s310 + $0x68] sm:$0xff] %vm769, %v766
        %784 = vst.msk [vmem:[%s310 + $0x70] sm:$0xff] %vm769, %v767
        %785 = vst.msk [vmem:[%s310 + $0x78] sm:$0xff] %vm769, %v768
        %786 = vmatprep.subr.mxu0 0.0
        %787 = vmatpush1.msra.mxu0 %v607
        %788 = vmatprep.subr.mxu0 0.0
        %789 = vmatpush1.msra.mxu0 %v606
        %790 = vmatprep.subr.mxu0 0.0
        %791 = vmatpush1.msra.mxu0 %v605
        %792 = vmatprep.subr.mxu0 0.0
        %793 = vmatpush1.msra.mxu0 %v604
        %794 = vmatprep.subr.mxu0 0.0
        %795 = vmatpush1.msra.mxu0 %v603
        %796 = vmatprep.subr.mxu0 0.0
        %797 = vmatpush1.msra.mxu0 %v602
        %798 = vmatprep.subr.mxu0 0.0
        %799 = vmatpush1.msra.mxu0 %v601
        %800 = vmatprep.subr.mxu0 0.0
        %801 = vmatpush1.msra.mxu0 %v600
        %802 = vmatprep.subr.mxu0 0.0
        %803 = vmatpush1.msra.mxu0 %v599
        %804 = vmatprep.subr.mxu0 0.0
        %805 = vmatpush1.msra.mxu0 %v598
        %806 = vmatprep.subr.mxu0 0.0
        %807 = vmatpush1.msra.mxu0 %v597
        %808 = vmatprep.subr.mxu0 0.0
        %809 = vmatpush1.msra.mxu0 %v596
        %810 = vmatprep.subr.mxu0 0.0
        %811 = vmatpush1.msra.mxu0 %v595
        %812 = vmatprep.subr.mxu0 0.0
        %813 = vmatpush1.msra.mxu0 %v594
        %814 = vmatprep.subr.mxu0 0.0
        %815 = vmatpush1.msra.mxu0 %v593
        %816 = vmatprep.subr.mxu0 0.0
        %817 = vmatpush1.msra.mxu0 %v592
        %818 = vmatprep.subr.mxu0 0.0
        %819 = vmatpush2.msra.mxu0 0.0
        %820 = vmatprep.subr.mxu0 0.0
        %821 = vmatpush2.msra.mxu0 0.0
        %822 = vmatprep.subr.mxu0 0.0
        %823 = vmatpush2.msra.mxu0 0.0
        %824 = vmatprep.subr.mxu0 0.0
        %825 = vmatpush2.msra.mxu0 0.0
        %826 = vmatprep.subr.mxu0 0.0
        %827 = vmatpush2.msra.mxu0 0.0
        %828 = vmatprep.subr.mxu0 0.0
        %829 = vmatpush2.msra.mxu0 0.0
        %830 = vmatprep.subr.mxu0 0.0
        %831 = vmatpush2.msra.mxu0 0.0
        %832 = vmatprep.subr.mxu0 0.0
        %833 = vmatpush2.msra.mxu0 0.0
        %834 = vmatprep.subr.mxu0 0.0
        %835 = vmatpush2.msra.mxu0 0.0
        %836 = vmatprep.subr.mxu0 0.0
        %837 = vmatpush2.msra.mxu0 0.0
        %838 = vmatprep.subr.mxu0 0.0
        %839 = vmatpush2.msra.mxu0 0.0
        %840 = vmatprep.subr.mxu0 0.0
        %841 = vmatpush2.msra.mxu0 0.0
        %842 = vmatprep.subr.mxu0 0.0
        %843 = vmatpush2.msra.mxu0 0.0
        %844 = vmatprep.subr.mxu0 0.0
        %845 = vmatpush2.msra.mxu0 0.0
        %846 = vmatprep.subr.mxu0 0.0
        %847 = vmatpush2.msra.mxu0 0.0
        %848 = vmatprep.subr.mxu0 0.0
        %849 = vmatpush2.msra.mxu0 0.0
        %850 = vmatprep.mubr.f32.mxu0 0.0
        %851 = vmatmul.mubr.f32.gmra.mxu0 %v468
        %v852 = vpop.f32.mrf.mxu0
        %v853 = vadd.f32 0.0, %v852
        %v854 = vpop.f32.mrf.mxu0
        %855 = vmatprep.mubr.f32.mxu0 0.0
        %856 = vmatmul.mubr.f32.gmra.mxu0 %v474
        %v857 = vpop.f32.mrf.mxu0
        %v858 = vadd.f32 0.0, %v857
        %v859 = vpop.f32.mrf.mxu0
        %860 = vmatprep.mubr.f32.mxu0 0.0
        %861 = vmatmul.mubr.f32.gmra.mxu0 %v480
        %v862 = vpop.f32.mrf.mxu0
        %v863 = vadd.f32 0.0, %v862
        %v864 = vpop.f32.mrf.mxu0
        %865 = vmatprep.mubr.f32.mxu0 0.0
        %866 = vmatmul.mubr.f32.gmra.mxu0 %v486
        %v867 = vpop.f32.mrf.mxu0
        %v868 = vadd.f32 0.0, %v867
        %v869 = vpop.f32.mrf.mxu0
        %870 = vmatprep.mubr.f32.mxu0 0.0
        %871 = vmatmul.mubr.f32.gmra.mxu0 %v492
        %v872 = vpop.f32.mrf.mxu0
        %v873 = vadd.f32 0.0, %v872
        %v874 = vpop.f32.mrf.mxu0
        %875 = vmatprep.mubr.f32.mxu0 0.0
        %876 = vmatmul.mubr.f32.gmra.mxu0 %v498
        %v877 = vpop.f32.mrf.mxu0
        %v878 = vadd.f32 0.0, %v877
        %v879 = vpop.f32.mrf.mxu0
        %880 = vmatprep.mubr.f32.mxu0 0.0
        %881 = vmatmul.mubr.f32.gmra.mxu0 %v504
        %v882 = vpop.f32.mrf.mxu0
        %v883 = vadd.f32 0.0, %v882
        %v884 = vpop.f32.mrf.mxu0
        %885 = vmatprep.mubr.f32.mxu0 0.0
        %886 = vmatmul.mubr.f32.gmra.mxu0 %v510
        %v887 = vpop.f32.mrf.mxu0
        %v888 = vadd.f32 0.0, %v887
        %v889 = vpop.f32.mrf.mxu0
        %890 = vmatprep.mubr.f32.mxu0 0.0
        %891 = vmatmul.mubr.f32.gmra.mxu0 %v516
        %v892 = vpop.f32.mrf.mxu0
        %v893 = vadd.f32 0.0, %v892
        %v894 = vpop.f32.mrf.mxu0
        %895 = vmatprep.mubr.f32.mxu0 0.0
        %896 = vmatmul.mubr.f32.gmra.mxu0 %v522
        %v897 = vpop.f32.mrf.mxu0
        %v898 = vadd.f32 0.0, %v897
        %v899 = vpop.f32.mrf.mxu0
        %900 = vmatprep.mubr.f32.mxu0 0.0
        %901 = vmatmul.mubr.f32.gmra.mxu0 %v528
        %v902 = vpop.f32.mrf.mxu0
        %v903 = vadd.f32 0.0, %v902
        %v904 = vpop.f32.mrf.mxu0
        %905 = vmatprep.mubr.f32.mxu0 0.0
        %906 = vmatmul.mubr.f32.gmra.mxu0 %v534
        %v907 = vpop.f32.mrf.mxu0
        %v908 = vadd.f32 0.0, %v907
        %v909 = vpop.f32.mrf.mxu0
        %910 = vmatprep.mubr.f32.mxu0 0.0
        %911 = vmatmul.mubr.f32.gmra.mxu0 %v540
        %v912 = vpop.f32.mrf.mxu0
        %v913 = vadd.f32 0.0, %v912
        %v914 = vpop.f32.mrf.mxu0
        %915 = vmatprep.mubr.f32.mxu0 0.0
        %916 = vmatmul.mubr.f32.gmra.mxu0 %v546
        %v917 = vpop.f32.mrf.mxu0
        %v918 = vadd.f32 0.0, %v917
        %v919 = vpop.f32.mrf.mxu0
        %920 = vmatprep.mubr.f32.mxu0 0.0
        %921 = vmatmul.mubr.f32.gmra.mxu0 %v552
        %v922 = vpop.f32.mrf.mxu0
        %v923 = vadd.f32 0.0, %v922
        %v924 = vpop.f32.mrf.mxu0
        %925 = vmatprep.mubr.f32.mxu0 0.0
        %926 = vmatmul.mubr.f32.gmra.mxu0 %v558
        %v927 = vpop.f32.mrf.mxu0
        %v928 = vadd.f32 0.0, %v927
        %v929 = vpop.f32.mrf.mxu0
        %930 = vdwg.mxu0
        %v931 = vmul.f32 %v853, 0.6
        %v932 = vmul.f32 %v858, 0.6
        %v933 = vmul.f32 %v863, 0.6
        %v934 = vmul.f32 %v868, 0.6
        %v935 = vmul.f32 %v873, 0.6
        %v936 = vmul.f32 %v878, 0.6
        %v937 = vmul.f32 %v883, 0.6
        %v938 = vmul.f32 %v888, 0.6
        %v939 = vmul.f32 %v893, 0.6
        %v940 = vmul.f32 %v898, 0.6
        %v941 = vmul.f32 %v903, 0.6
        %v942 = vmul.f32 %v908, 0.6
        %v943 = vmul.f32 %v913, 0.6
        %v944 = vmul.f32 %v918, 0.6
        %v945 = vmul.f32 %v923, 0.6
        %v946 = vmul.f32 %v928, 0.6
        %947 = vst.msk [vmem:[%s316] sm:$0xff] %vm769, %v931
        %948 = vst.msk [vmem:[%s316 + $0x8] sm:$0xff] %vm769, %v932
        %949 = vst.msk [vmem:[%s316 + $0x10] sm:$0xff] %vm769, %v933
        %950 = vst.msk [vmem:[%s316 + $0x18] sm:$0xff] %vm769, %v934
        %951 = vst.msk [vmem:[%s316 + $0x20] sm:$0xff] %vm769, %v935
        %952 = vst.msk [vmem:[%s316 + $0x28] sm:$0xff] %vm769, %v936
        %953 = vst.msk [vmem:[%s316 + $0x30] sm:$0xff] %vm769, %v937
        %954 = vst.msk [vmem:[%s316 + $0x38] sm:$0xff] %vm769, %v938
        %955 = vst.msk [vmem:[%s316 + $0x40] sm:$0xff] %vm769, %v939
        %956 = vst.msk [vmem:[%s316 + $0x48] sm:$0xff] %vm769, %v940
        %957 = vst.msk [vmem:[%s316 + $0x50] sm:$0xff] %vm769, %v941
        %958 = vst.msk [vmem:[%s316 + $0x58] sm:$0xff] %vm769, %v942
        %959 = vst.msk [vmem:[%s316 + $0x60] sm:$0xff] %vm769, %v943
        %960 = vst.msk [vmem:[%s316 + $0x68] sm:$0xff] %vm769, %v944
        %961 = vst.msk [vmem:[%s316 + $0x70] sm:$0xff] %vm769, %v945
        %962 = vst.msk [vmem:[%s316 + $0x78] sm:$0xff] %vm769, %v946
        %s963 = sand.u32 %s122, 1
        %s964 = scalar_lea.sflag [#allocation3], %s963
        %s965 = sand.u32 %s122, 1
        %s966 = smul.addr %s965, 128
        %s967 = scalar_lea.vmem [#allocation2], %s966
        %s968 = sand.u32 %s148, 1
        %s969 = scalar_lea.sflag [#allocation5], %s968
        %s970 = sand.u32 %s148, 1
        %s971 = smul.addr %s970, 128
        %s972 = scalar_lea.vmem [#allocation4], %s971
        %s973 = smul.u32 16, %s25
        %p974 = scmp.lt.s32.totalorder %s973, 31
        %s975 = scalar_select %p974, %s973, 31
        %s976 = smul.addr %s975, 8
        %s977 = scalar_lea.vmem %s6, %s976
        %s978 = smul.u32 16, %s25
        %p979 = scmp.lt.s32.totalorder %s978, 31
        %s980 = scalar_select %p979, %s978, 31
        %s981 = smul.addr %s980, 8
        %s982 = scalar_lea.vmem %s7, %s981
        // Predicated region
        $region37: #{tpu_custom_call.1} parent=35 // pred_check
          %p983 = pneg %p132
        $region38: #{tpu_custom_call.1} parent=35 // pred_check_branch
          %985 = sbr.rel (%p983) target = $region40
        $region39: #{tpu_custom_call.1} parent=35 // pred_region
          %s986 = smul.u32 16, %s25
          %s988 = ssub.s32 2048, 2048
          %989 = vsyncadd %s964, %s988
          %s990 = smul.addr %s986, 128
          %s991 = scalar_lea.hbm %s4, %s990
          %s992 = sshll.u32 %s967, 4
          %s993 = int_to_ptr.vmem [resolvable:$true] %s992
          %998 = dma.vmem_to_hbm [thread:$0]  %s993, 2048, %s991, %s964, 128, 128, 8
        $region40: #{tpu_custom_call.1} parent=35 // pred_fallthru
          _
        // Predicated region
        $region41: #{tpu_custom_call.1} parent=35 // pred_check
          %p999 = pneg %p158
        $region42: #{tpu_custom_call.1} parent=35 // pred_check_branch
          %1001 = sbr.rel (%p999) target = $region44
        $region43: #{tpu_custom_call.1} parent=35 // pred_region
          %s1002 = smul.u32 16, %s25
          %s1004 = ssub.s32 2048, 2048
          %1005 = vsyncadd %s969, %s1004
          %s1006 = smul.addr %s1002, 128
          %s1007 = scalar_lea.hbm %s5, %s1006
          %s1008 = sshll.u32 %s972, 4
          %s1009 = int_to_ptr.vmem [resolvable:$true] %s1008
          %1014 = dma.vmem_to_hbm [thread:$0]  %s1009, 2048, %s1007, %s969, 128, 128, 8
        $region44: #{tpu_custom_call.1} parent=35 // pred_fallthru
          _
        // Predicated region
        $region45: #{tpu_custom_call.1} parent=35 // pred_check
          %p1015 = pneg %p184
        $region46: #{tpu_custom_call.1} parent=35 // pred_check_branch
          %1017 = sbr.rel (%p1015) target = $region48
        $region47: #{tpu_custom_call.1} parent=35 // pred_region
          %s1018 = smul.u32 16, %s25
        $region48: #{tpu_custom_call.1} parent=35 // pred_fallthru
          _
        // Predicated region
        $region49: #{tpu_custom_call.1} parent=35 // pred_check
          %p1019 = pneg %p210
        $region50: #{tpu_custom_call.1} parent=35 // pred_check_branch
          %1021 = sbr.rel (%p1019) target = $region52
        $region51: #{tpu_custom_call.1} parent=35 // pred_region
          %s1022 = smul.u32 16, %s25
        $region52: #{tpu_custom_call.1} parent=35 // pred_fallthru
          _
      $region36: #{tpu_custom_call.1} parent=5 // pred_fallthru
        _
      %p1023 = scmp.le.s32.totalorder 2, %s20
      // Predicated region
      $region53: #{tpu_custom_call.1} parent=5 // pred_check
        %p1024 = pneg %p1023
      $region54: #{tpu_custom_call.1} parent=5 // pred_check_branch
        %1026 = sbr.rel (%p1024) target = $region56
      $region55: #{tpu_custom_call.1} parent=5 // pred_region
        %s1027 = ssub.s32 %s20, 2
        // Predicated region
        $region57: #{tpu_custom_call.1} parent=55 // pred_check
          %p1028 = pneg %p138
        $region58: #{tpu_custom_call.1} parent=55 // pred_check_branch
          %1030 = sbr.rel (%p1028) target = $region60
        $region59: #{tpu_custom_call.1} parent=55 // pred_region
          %s1031 = sand.u32 %s123, 1
          %s1032 = scalar_lea.sflag [#allocation3], %s1031
          %s1033 = sand.u32 %s123, 1
          %s1034 = smul.addr %s1033, 128
          %s1035 = scalar_lea.vmem [#allocation2], %s1034
          %1036 = dma.done %s1032, 2048
        $region60: #{tpu_custom_call.1} parent=55 // pred_fallthru
          _
        // Predicated region
        $region61: #{tpu_custom_call.1} parent=55 // pred_check
          %p1037 = pneg %p164
        $region62: #{tpu_custom_call.1} parent=55 // pred_check_branch
          %1039 = sbr.rel (%p1037) target = $region64
        $region63: #{tpu_custom_call.1} parent=55 // pred_region
          %s1040 = sand.u32 %s149, 1
          %s1041 = scalar_lea.sflag [#allocation5], %s1040
          %s1042 = sand.u32 %s149, 1
          %s1043 = smul.addr %s1042, 128
          %s1044 = scalar_lea.vmem [#allocation4], %s1043
          %1045 = dma.done %s1041, 2048
        $region64: #{tpu_custom_call.1} parent=55 // pred_fallthru
          _
        // Predicated region
        $region65: #{tpu_custom_call.1} parent=55 // pred_check
          %p1046 = pneg %p190
        $region66: #{tpu_custom_call.1} parent=55 // pred_check_branch
          %1048 = sbr.rel (%p1046) target = $region68
        $region67: #{tpu_custom_call.1} parent=55 // pred_region
          %s1049 = smul.u32 16, %s26
          %p1050 = scmp.lt.s32.totalorder %s1049, 31
          %s1051 = scalar_select %p1050, %s1049, 31
          %s1052 = smul.addr %s1051, 8
          %s1053 = scalar_lea.vmem %s6, %s1052
        $region68: #{tpu_custom_call.1} parent=55 // pred_fallthru
          _
        // Predicated region
        $region69: #{tpu_custom_call.1} parent=55 // pred_check
          %p1054 = pneg %p216
        $region70: #{tpu_custom_call.1} parent=55 // pred_check_branch
          %1056 = sbr.rel (%p1054) target = $region72
        $region71: #{tpu_custom_call.1} parent=55 // pred_region
          %s1057 = smul.u32 16, %s26
          %p1058 = scmp.lt.s32.totalorder %s1057, 31
          %s1059 = scalar_select %p1058, %s1057, 31
          %s1060 = smul.addr %s1059, 8
          %s1061 = scalar_lea.vmem %s7, %s1060
        $region72: #{tpu_custom_call.1} parent=55 // pred_fallthru
          _
      $region56: #{tpu_custom_call.1} parent=5 // pred_fallthru
        _
    $region6: #{tpu_custom_call.1} parent=1 // loop_footer
      %s24 = sadd.s32 1, %s20
    $region7: #{tpu_custom_call.1} parent=1 // loop_footer_branch
      %19 = sbr.rel target = $region3
    $region8: #{tpu_custom_call.1} parent=1 // loop_exit
      _
    %1062 = vsyncpa [#allocation3], 1
    %s1063 = scalar_lea.sflag [#allocation3], 1
    %1064 = vsyncpa %s1063, 1
    %1065 = vsyncpa [#allocation5], 1
    %s1066 = scalar_lea.sflag [#allocation5], 1
    %1067 = vsyncpa %s1066, 1

</llo_original>
